<compile_context>
chip_gen: v5e
topology: v5e:2x2
jax: 0.10.0
libtpu: 0.0.40
codegen_flags: <defaults>
</compile_context>

<pallas_src>
import functools

import jax
import jax.numpy as jnp
from jax.experimental import pallas as pl
from jax.experimental.pallas import tpu as pltpu


LANES = 128            # vreg lane width
SUBLANES = 8           # f32 sublane packing
MAX_TILE_ROWS = 2048   # 2048*128*4B = 1 MiB per input tile -> 6 MiB double-buffered


def _weighted_l1_partial_kernel(p_ref, t_ref, w_ref, o_ref, *, valid_rows, tile_rows):
    # Upcast inside the kernel (DMA carries the native dtype; accumulate in f32).
    p = p_ref[...].astype(jnp.float32)
    t = t_ref[...].astype(jnp.float32)
    w = w_ref[...].astype(jnp.float32)
    vals = jnp.abs(p - t) * w                                  # (tile_rows, LANES)

    if valid_rows % tile_rows != 0:
        # Last grid block extends past the (padded) array: mask the garbage rows.
        row_ids = (pl.program_id(0) * tile_rows
                   + jax.lax.broadcasted_iota(jnp.int32, vals.shape, 0))
        vals = jnp.where(row_ids < valid_rows, vals, 0.0)

    # (tile_rows, 128) -> (8, 128) partial sum: the reshape is sublane-aligned
    # (each (8,128) slice is a native vreg), so the reduction is pure VPU adds
    # over whole vregs and the output store is an unmasked lane-dense vst.
    o_ref[...] = jnp.sum(vals.reshape(tile_rows // SUBLANES, SUBLANES, LANES), axis=0)


def weighted_l1_loss(prediction, target, weight):
    """mean(|prediction - target| * weight), computed with a Pallas TPU kernel."""
    assert prediction.shape == target.shape == weight.shape
    n = prediction.size
    out_dtype = jnp.result_type(prediction.dtype, target.dtype, weight.dtype)

    rows = pl.cdiv(n, LANES)
    rows_p = pl.cdiv(rows, SUBLANES) * SUBLANES        # sublane-aligned row count
    tile_rows = min(MAX_TILE_ROWS, rows_p)             # multiple of 8, <= rows_p
    num_tiles = pl.cdiv(rows_p, tile_rows)

    def prep(x):
        # Keep native dtype (bf16 stays bf16 in HBM); upcast happens in-kernel.
        flat = jnp.ravel(x)
        if rows_p * LANES != n:
            # Pad only when the element count is not divisible by 1024; the
            # zero padding contributes |0-0|*0 = 0 to the sum.
            flat = jnp.pad(flat, (0, rows_p * LANES - n))
        return flat.reshape(rows_p, LANES)

    p2, t2, w2 = prep(prediction), prep(target), prep(weight)

    kernel = functools.partial(
        _weighted_l1_partial_kernel, valid_rows=rows_p, tile_rows=tile_rows)

    in_spec = pl.BlockSpec((tile_rows, LANES), lambda i: (i, 0))
    out_rows = num_tiles * SUBLANES

    bytes_accessed = (p2.size * p2.dtype.itemsize
                      + t2.size * t2.dtype.itemsize
                      + w2.size * w2.dtype.itemsize
                      + out_rows * LANES * 4)
    cost = pl.CostEstimate(flops=3 * n, transcendentals=0,
                           bytes_accessed=bytes_accessed)

    partials = pl.pallas_call(
        kernel,
        out_shape=jax.ShapeDtypeStruct((out_rows, LANES), jnp.float32),
        grid_spec=pltpu.PrefetchScalarGridSpec(
            num_scalar_prefetch=0,
            grid=(num_tiles,),
            in_specs=[in_spec, in_spec, in_spec],
            out_specs=pl.BlockSpec((SUBLANES, LANES), lambda i: (i, 0)),
        ),
        compiler_params=pltpu.CompilerParams(
            dimension_semantics=("parallel",),   # v7x: shard tile loop over both TCs
        ),
        cost_estimate=cost,
    )(p2, t2, w2)

    # Tiny (num_tiles*8, 128) slab -> scalar; divide by the TRUE element count.
    mean = jnp.sum(partials) / jnp.float32(n)
    return mean.astype(out_dtype)


if __name__ == "__main__":
    key = jax.random.PRNGKey(0)
    k1, k2, k3 = jax.random.split(key, 3)

    # Small NCHW-style shapes consistent with a typical use of this loss.
    shape = (2, 4, 16, 16)
    prediction = jax.random.normal(k1, shape, dtype=jnp.float32)
    target = jax.random.normal(k2, shape, dtype=jnp.float32)
    weight = jax.random.uniform(k3, shape, dtype=jnp.float32)

    loss = weighted_l1_loss(prediction, target, weight)
    jax.block_until_ready(loss)

    # Reference check in plain JAX.
    ref = jnp.mean(jnp.abs(prediction - target) * weight)
    assert jnp.allclose(loss, ref, rtol=1e-5, atol=1e-6), (loss, ref)

    print("KERNEL_OK")
</pallas_src>

<mosaic_0001>
module attributes {stable_mosaic.version = 11 : i64} {
  func.func @_weighted_l1_partial_kernel(%arg0: i32, %arg1: memref<16x128xf32, #tpu.memory_space<vmem>>, %arg2: memref<16x128xf32, #tpu.memory_space<vmem>>, %arg3: memref<16x128xf32, #tpu.memory_space<vmem>>, %arg4: memref<8x128xf32, #tpu.memory_space<vmem>>) attributes {dimension_semantics = [#tpu.dimension_semantics<parallel>], iteration_bounds = array<i64: 1>, scalar_prefetch = 0 : i64, scratch_operands = 0 : i64, tpu.core_type = #tpu.core_type<tc>, window_params = [{transform_indices = @transform_0, window_bounds = array<i64: 16, 128>}, {transform_indices = @transform_1, window_bounds = array<i64: 16, 128>}, {transform_indices = @transform_2, window_bounds = array<i64: 16, 128>}, {transform_indices = @transform_3, window_bounds = array<i64: 8, 128>}]} {
    %c0 = arith.constant 0 : index
    %c0_0 = arith.constant 0 : index
    %0 = vector.load %arg1[%c0, %c0_0] : memref<16x128xf32, #tpu.memory_space<vmem>>, vector<16x128xf32>
    %c0_1 = arith.constant 0 : index
    %c0_2 = arith.constant 0 : index
    %1 = vector.load %arg2[%c0_1, %c0_2] : memref<16x128xf32, #tpu.memory_space<vmem>>, vector<16x128xf32>
    %c0_3 = arith.constant 0 : index
    %c0_4 = arith.constant 0 : index
    %2 = vector.load %arg3[%c0_3, %c0_4] : memref<16x128xf32, #tpu.memory_space<vmem>>, vector<16x128xf32>
    %3 = arith.subf %0, %1 : vector<16x128xf32>
    %4 = math.absf %3 : vector<16x128xf32>
    %5 = arith.mulf %4, %2 : vector<16x128xf32>
    %6 = vector.shape_cast %5 : vector<16x128xf32> to vector<2x8x128xf32>
    %cst = arith.constant dense<0.000000e+00> : vector<8x128xf32>
    %7 = vector.multi_reduction <add>, %6, %cst [0] : vector<2x8x128xf32> to vector<8x128xf32>
    %c0_5 = arith.constant 0 : index
    %c0_6 = arith.constant 0 : index
    %8 = vector.load %arg4[%c0_5, %c0_6] : memref<8x128xf32, #tpu.memory_space<vmem>>, vector<8x128xf32>
    tpu.vector_store %arg4[%c0_5, %c0_6], %7 {strides = array<i32>} : memref<8x128xf32, #tpu.memory_space<vmem>>, vector<8x128xf32>,
    return
  }
  func.func @transform_0(%arg0: i32) -> (i32, i32) {
    %c0_i32 = arith.constant 0 : i32
    %c0_i32_0 = arith.constant 0 : i32
    return %arg0, %c0_i32 : i32, i32
  }
  func.func @transform_1(%arg0: i32) -> (i32, i32) {
    %c0_i32 = arith.constant 0 : i32
    %c0_i32_0 = arith.constant 0 : i32
    return %arg0, %c0_i32 : i32, i32
  }
  func.func @transform_2(%arg0: i32) -> (i32, i32) {
    %c0_i32 = arith.constant 0 : i32
    %c0_i32_0 = arith.constant 0 : i32
    return %arg0, %c0_i32 : i32, i32
  }
  func.func @transform_3(%arg0: i32) -> (i32, i32) {
    %c0_i32 = arith.constant 0 : i32
    %c0_i32_0 = arith.constant 0 : i32
    return %arg0, %c0_i32 : i32, i32
  }
}

</mosaic_0001>

<llo_original>
// kernel: tpu_custom_call.1
$region0: #{tpu_custom_call.1}
  #allocation0 [shape = 'u32[]', space=smem, size = 0x4, offset = 0x4, fixed_abs, tag = 'smem constant byte address 0x4 - core index']
  #allocation1 [shape = 'u32[72,128]{1,0:T(1,128)}', space=vmem, size = 0x9000, scoped, tag = 'internal scratch']
  %s0 = inlined_call_operand.hbm [shape: f32[16,128], index: 0, kind: input, shape index: {}]
  %s1 = inlined_call_operand.hbm [shape: f32[16,128], index: 1, kind: input, shape index: {}]
  %s2 = inlined_call_operand.hbm [shape: f32[16,128], index: 2, kind: input, shape index: {}]
  %s3 = inlined_call_operand.hbm [shape: f32[8,128], index: 3, kind: output, shape index: {}]
  %s4 = sld [smem:[#allocation0]]
  $region34: #{tpu_custom_call.1} parent=0
    _
  %s6 = ssub.s32 1, %s4
  %s7 = scalar_select 0, %s6, %s4
  $region1: #{tpu_custom_call.1} parent=0
    #allocation2 [shape = 'u8[8192]{0}', space=vmem, size = 0x2000, scoped, tag = 'input window, operand 0, single buffered']
    #allocation3 [shape = 's32[1]{0}', space=sflag, size = 0x4, scoped, tag = 'scoped memory for tpu_custom_call.1']
    #allocation4 [shape = 's32[1]{0}', space=sflag, size = 0x4, scoped, tag = 'scoped memory for tpu_custom_call.1']
    #allocation5 [shape = 'u8[8192]{0}', space=vmem, size = 0x2000, scoped, tag = 'input window, operand 1, single buffered']
    #allocation6 [shape = 's32[1]{0}', space=sflag, size = 0x4, scoped, tag = 'scoped memory for tpu_custom_call.1']
    #allocation7 [shape = 'u8[8192]{0}', space=vmem, size = 0x2000, scoped, tag = 'input window, operand 2, single buffered']
    #allocation8 [shape = 'u8[4096]{0}', space=vmem, size = 0x1000, scoped, tag = 'output window, operand 0, single buffered']
    %8 = vsyncpa [#allocation3], 0
    %9 = vsyncpa [#allocation6], 0
    %10 = vsyncpa [#allocation4], 0
    // Predicated region
    $region2: #{tpu_custom_call.1} parent=1 // pred_check
      _
    $region3: #{tpu_custom_call.1} parent=1 // pred_check_branch
      %12 = sbr.rel (0) target = $region5
    $region4: #{tpu_custom_call.1} parent=1 // pred_region
      %14 = vsyncadd [#allocation3], 0
      %s15 = sshll.u32 %s0, 4
      %s16 = int_to_ptr.hbm [resolvable:$true] %s15
      %s17 = sshll.u32 [#allocation2], 4
      %s18 = int_to_ptr.vmem [resolvable:$true] %s17
      %23 = dma.hbm_to_vmem [thread:$0]  %s16, 256, %s18, [#allocation3], 128, 128, 8
    $region5: #{tpu_custom_call.1} parent=1 // pred_fallthru
      _
    // Predicated region
    $region6: #{tpu_custom_call.1} parent=1 // pred_check
      _
    $region7: #{tpu_custom_call.1} parent=1 // pred_check_branch
      %25 = sbr.rel (0) target = $region9
    $region8: #{tpu_custom_call.1} parent=1 // pred_region
      %27 = vsyncadd [#allocation6], 0
      %s28 = sshll.u32 %s1, 4
      %s29 = int_to_ptr.hbm [resolvable:$true] %s28
      %s30 = sshll.u32 [#allocation5], 4
      %s31 = int_to_ptr.vmem [resolvable:$true] %s30
      %36 = dma.hbm_to_vmem [thread:$0]  %s29, 256, %s31, [#allocation6], 128, 128, 8
    $region9: #{tpu_custom_call.1} parent=1 // pred_fallthru
      _
    // Predicated region
    $region10: #{tpu_custom_call.1} parent=1 // pred_check
      _
    $region11: #{tpu_custom_call.1} parent=1 // pred_check_branch
      %38 = sbr.rel (0) target = $region13
    $region12: #{tpu_custom_call.1} parent=1 // pred_region
      %40 = vsyncadd [#allocation6], 0
      %s41 = sshll.u32 %s2, 4
      %s42 = int_to_ptr.hbm [resolvable:$true] %s41
      %s43 = sshll.u32 [#allocation7], 4
      %s44 = int_to_ptr.vmem [resolvable:$true] %s43
      %49 = dma.hbm_to_vmem [thread:$0]  %s42, 256, %s44, [#allocation6], 128, 128, 8
    $region13: #{tpu_custom_call.1} parent=1 // pred_fallthru
      _
    // Predicated region
    $region14: #{tpu_custom_call.1} parent=1 // pred_check
      _
    $region15: #{tpu_custom_call.1} parent=1 // pred_check_branch
      %51 = sbr.rel (0) target = $region17
    $region16: #{tpu_custom_call.1} parent=1 // pred_region
      %53 = dma.done [#allocation3], 256
    $region17: #{tpu_custom_call.1} parent=1 // pred_fallthru
      _
    // Predicated region
    $region18: #{tpu_custom_call.1} parent=1 // pred_check
      _
    $region19: #{tpu_custom_call.1} parent=1 // pred_check_branch
      %55 = sbr.rel (0) target = $region21
    $region20: #{tpu_custom_call.1} parent=1 // pred_region
      %57 = dma.done [#allocation6], 256
    $region21: #{tpu_custom_call.1} parent=1 // pred_fallthru
      _
    // Predicated region
    $region22: #{tpu_custom_call.1} parent=1 // pred_check
      _
    $region23: #{tpu_custom_call.1} parent=1 // pred_check_branch
      %59 = sbr.rel (0) target = $region25
    $region24: #{tpu_custom_call.1} parent=1 // pred_region
      %61 = dma.done [#allocation6], 256
    $region25: #{tpu_custom_call.1} parent=1 // pred_fallthru
      _
    %v62 = vld [vmem:[#allocation2] sm:$0xff]
    %v63 = vld [vmem:[#allocation2 + $0x8] sm:$0xff]
    %v64 = vld [vmem:[#allocation5] sm:$0xff]
    %v65 = vld [vmem:[#allocation5 + $0x8] sm:$0xff]
    %v66 = vld [vmem:[#allocation7] sm:$0xff]
    %v67 = vld [vmem:[#allocation7 + $0x8] sm:$0xff]
    %v68 = vsub.f32 %v62, %v64
    %v69 = vsub.f32 %v63, %v65
    %v70 = vand.u32 2147483647, %v68
    %v71 = vand.u32 2147483647, %v69
    %v72 = vmul.f32 %v70, %v66
    %v73 = vmul.f32 %v71, %v67
    %v74 = vadd.f32 %v72, %v73
    %75 = vst [vmem:[#allocation8] sm:$0xff] %v74
    // Predicated region
    $region26: #{tpu_custom_call.1} parent=1 // pred_check
      _
    $region27: #{tpu_custom_call.1} parent=1 // pred_check_branch
      %77 = sbr.rel (0) target = $region29
    $region28: #{tpu_custom_call.1} parent=1 // pred_region
      %79 = vsyncadd [#allocation4], 0
      %s81 = sshll.u32 [#allocation8], 4
      %s82 = int_to_ptr.vmem [resolvable:$true] %s81
      %s83 = sshll.u32 %s3, 4
      %s84 = int_to_ptr.hbm [resolvable:$true] %s83
      %86 = dma.vmem_to_hbm [thread:$0]  %s82, 128, %s84, [#allocation4]
    $region29: #{tpu_custom_call.1} parent=1 // pred_fallthru
      _
    // Predicated region
    $region30: #{tpu_custom_call.1} parent=1 // pred_check
      _
    $region31: #{tpu_custom_call.1} parent=1 // pred_check_branch
      %88 = sbr.rel (0) target = $region33
    $region32: #{tpu_custom_call.1} parent=1 // pred_region
      %90 = dma.done [#allocation4], 128
    $region33: #{tpu_custom_call.1} parent=1 // pred_fallthru
      _
    %91 = vsyncpa [#allocation3], 1
    %92 = vsyncpa [#allocation6], 1
    %93 = vsyncpa [#allocation4], 1

</llo_original>
